<compile_context>
chip_gen: v7x
topology: tpu7x:2x2x1
jax: 0.10.0
libtpu: 0.0.40
codegen_flags: <defaults>
</compile_context>

<pallas_src>
import jax
import jax.numpy as jnp
from jax.experimental import pallas as pl
from jax.experimental.pallas import tpu as pltpu


_LANE = 128          # lane width (last-dim granularity)
_SUBLANE_F32 = 8     # f32 sublane granularity
_SUBLANE_BF16 = 16   # bf16 packs 2 rows per sublane


def _cdiv(a: int, b: int) -> int:
    return -(-a // b)


def _round_up(x: int, m: int) -> int:
    return _cdiv(x, m) * m


def _choose_tile(extent: int, cap: int, gran: int):
    """Pick a gran-aligned tile <= cap that minimizes padding waste.

    Returns (tile, padded_extent, n_tiles) with padded_extent == tile * n_tiles.
    """
    cap = max(_round_up(min(cap, extent), gran), gran)
    n_tiles = _cdiv(extent, cap)
    tile = _round_up(_cdiv(extent, n_tiles), gran)
    return tile, tile * n_tiles, n_tiles


def _mapping_kernel(x_ref, w_ref, b_ref, o_ref, acc_ref):
    """One (tb,tk) x (tk,tn) MXU step; bias + ReLU + cast epilogue on last k."""
    k = pl.program_id(2)

    @pl.when(k == 0)
    def _():
        acc_ref[...] = jnp.zeros_like(acc_ref)

    acc_ref[...] += jnp.dot(x_ref[...], w_ref[...],
                            preferred_element_type=jnp.float32)

    @pl.when(k == pl.num_programs(2) - 1)
    def _():
        y = acc_ref[...] + b_ref[...].astype(jnp.float32)   # (1, tn) broadcast
        o_ref[...] = jnp.maximum(y, 0.0).astype(o_ref.dtype)


def mapping_forward(
    x: jax.Array,
    weight: jax.Array,
    bias: jax.Array,
    *,
    block_b: int = 512,
    block_n: int = 512,
    compute_dtype=None,
) -> jax.Array:
    """ReLU(x @ W + b).  x: (B, in_dim), weight: (in_dim, out_dim), bias: (out_dim,).

    compute_dtype=jnp.bfloat16 feeds the MXU in bf16 (f32 accumulate/epilogue);
    for the HBM-traffic win the caller should persist `weight` in bf16 rather
    than relying on the cast here.
    """
    B, K = x.shape
    K_w, N = weight.shape
    assert K == K_w
    out_dtype = x.dtype

    if compute_dtype is not None:
        x = x.astype(compute_dtype)
        weight = weight.astype(compute_dtype)
    bias = bias.astype(jnp.float32)

    in_itemsize = jnp.dtype(x.dtype).itemsize
    out_itemsize = jnp.dtype(out_dtype).itemsize
    sub = _SUBLANE_BF16 if in_itemsize == 2 else _SUBLANE_F32

    # ---- per-generation VMEM budget ----
    try:
        vmem_cap = int(pltpu.get_tpu_info().vmem_capacity_bytes)
    except Exception:
        vmem_cap = 64 * 1024 * 1024        # conservative (v7x per-TC)
    budget = int(0.7 * vmem_cap)

    def vmem_need(tb_, tn_, tk_):
        # double-buffered x / w / bias input tiles + double-buffered out tile
        # + single-buffered f32 accumulator + headroom.
        return (2 * (tb_ * tk_ + tk_ * tn_ + tn_) * in_itemsize
                + 2 * tb_ * tn_ * out_itemsize
                + tb_ * tn_ * 4
                + (2 << 20))

    # ---- lane-dense N tiles, sublane-aligned B tiles, minimal pad waste ----
    tn, n_p, n_n = _choose_tile(N, block_n, _LANE)
    tb, b_p, n_b = _choose_tile(B, block_b, sub)

    # K tiles: prefer a single K step (enables residency of the stationary
    # operand across the middle grid axis); otherwise stream K panels.
    tk, k_p, n_k = _choose_tile(K, K, _LANE)
    k_full = k_p
    if vmem_need(tb, tn, tk) > budget:
        for cap in (2048, 1024, 512, 256, _LANE):
            if cap >= k_full:
                continue
            tk, k_p, n_k = _choose_tile(K, cap, _LANE)
            if vmem_need(tb, tn, tk) <= budget:
                break
    # Safety net: shrink batch / out tiles if still over budget.
    while vmem_need(tb, tn, tk) > budget and tb > sub:
        tb, b_p, n_b = _choose_tile(B, max(tb // 2, sub), sub)
    while vmem_need(tb, tn, tk) > budget and tn > _LANE:
        tn, n_p, n_n = _choose_tile(N, max(tn // 2, _LANE), _LANE)

    # v7x has 2 TensorCores: make sure a parallel axis has >= 2 steps.
    if n_b == 1 and n_n == 1 and b_p >= 2 * sub:
        n_b = 2
        tb = _round_up(_cdiv(B, n_b), sub)
        b_p = tb * n_b

    # ---- zero-pad to tile boundaries (padded rows/cols stripped afterwards;
    #      padded K region is zeros in both x and W, so it adds 0 to the dot) ----
    if (b_p, k_p) != (B, K):
        x = jnp.pad(x, ((0, b_p - B), (0, k_p - K)))
    if (k_p, n_p) != (K, N):
        weight = jnp.pad(weight, ((0, k_p - K), (0, n_p - N)))
    if n_p != N:
        bias = jnp.pad(bias, ((0, n_p - N),))
    bias2d = bias.reshape(1, n_p)

    # ---- grid order: keep the larger operand stationary ----
    weight_stationary = (k_p * n_p) >= (b_p * k_p)     # i.e. out_dim >= batch
    if weight_stationary:
        grid = (n_n, n_b, n_k)
        x_spec = pl.BlockSpec((tb, tk), lambda n, b, k: (b, k))
        w_spec = pl.BlockSpec((tk, tn), lambda n, b, k: (k, n))
        bias_spec = pl.BlockSpec((1, tn), lambda n, b, k: (0, n))
        out_spec = pl.BlockSpec((tb, tn), lambda n, b, k: (b, n))
    else:
        grid = (n_b, n_n, n_k)
        x_spec = pl.BlockSpec((tb, tk), lambda b, n, k: (b, k))
        w_spec = pl.BlockSpec((tk, tn), lambda b, n, k: (k, n))
        bias_spec = pl.BlockSpec((1, tn), lambda b, n, k: (0, n))
        out_spec = pl.BlockSpec((tb, tn), lambda b, n, k: (b, n))

    # ---- honest HBM-traffic estimate (includes re-reads of streamed operand) ----
    if n_k == 1:
        x_reads = n_n if weight_stationary else 1
        w_reads = 1 if weight_stationary else n_b
    else:
        x_reads, w_reads = n_n, n_b
    cost = pl.CostEstimate(
        flops=2 * b_p * k_p * n_p,
        transcendentals=0,
        bytes_accessed=int(x_reads * b_p * k_p * in_itemsize
                           + w_reads * k_p * n_p * in_itemsize
                           + n_p * 4
                           + b_p * n_p * out_itemsize),
    )

    vmem_limit = int(min(max(vmem_need(tb, tn, tk) + (2 << 20), 32 << 20),
                         vmem_cap))

    out_padded = pl.pallas_call(
        _mapping_kernel,
        out_shape=jax.ShapeDtypeStruct((b_p, n_p), out_dtype),
        grid_spec=pltpu.PrefetchScalarGridSpec(
            num_scalar_prefetch=0,
            grid=grid,
            in_specs=[x_spec, w_spec, bias_spec],
            out_specs=out_spec,
            scratch_shapes=[pltpu.VMEM((tb, tn), jnp.float32)],
        ),
        compiler_params=pltpu.CompilerParams(
            dimension_semantics=("parallel", "parallel", "arbitrary"),
            vmem_limit_bytes=vmem_limit,
        ),
        cost_estimate=cost,
    )(x, weight, bias2d)

    # Strip the lane/sublane padding.
    return out_padded[:B, :N]


if __name__ == "__main__":
    # Small shapes consistent with the module: x (batch, in_dim).
    batch, in_dim, out_dim = 64, 32, 16

    key = jax.random.PRNGKey(0)
    kx, kw, kb = jax.random.split(key, 3)

    x = jax.random.normal(kx, (batch, in_dim), dtype=jnp.float32)

    # Deterministic parameter init mimicking nn.Linear's uniform range.
    bound = 1.0 / (in_dim ** 0.5)
    # stored as (in_dim, out_dim) == PyTorch weight.T
    weight = jax.random.uniform(kw, (in_dim, out_dim), minval=-bound, maxval=bound,
                                dtype=jnp.float32)
    bias = jax.random.uniform(kb, (out_dim,), minval=-bound, maxval=bound,
                              dtype=jnp.float32)

    ref = jnp.maximum(x @ weight + bias[None, :], 0.0)

    # f32 path (bit-close to the reference).
    out = mapping_forward(x, weight, bias)
    out = jax.block_until_ready(out)
    assert out.shape == (batch, out_dim)
    assert jnp.allclose(out, ref, atol=1e-5, rtol=1e-5)

    # bf16 MXU-feed path (f32 accumulate/epilogue; looser tolerance).
    out_bf16 = mapping_forward(x, weight, bias, compute_dtype=jnp.bfloat16)
    out_bf16 = jax.block_until_ready(out_bf16)
    assert out_bf16.shape == (batch, out_dim)
    assert jnp.allclose(out_bf16, ref, atol=5e-2, rtol=5e-2)

    print("KERNEL_OK")
</pallas_src>

<mosaic_0001>
module attributes {stable_mosaic.version = 11 : i64} {
  func.func @_mapping_kernel(%arg0: i32, %arg1: i32, %arg2: i32, %arg3: memref<32x128xf32, #tpu.memory_space<vmem>>, %arg4: memref<128x128xf32, #tpu.memory_space<vmem>>, %arg5: memref<1x128xf32, #tpu.memory_space<vmem>>, %arg6: memref<32x128xf32, #tpu.memory_space<vmem>>, %arg7: memref<32x128xf32, #tpu.memory_space<vmem>>) attributes {dimension_semantics = [#tpu.dimension_semantics<parallel>, #tpu.dimension_semantics<parallel>, #tpu.dimension_semantics<arbitrary>], iteration_bounds = array<i64: 1, 2, 1>, scalar_prefetch = 0 : i64, scratch_operands = 1 : i64, tpu.core_type = #tpu.core_type<tc>, window_params = [{transform_indices = @transform_0, window_bounds = array<i64: 32, 128>}, {transform_indices = @transform_1, window_bounds = array<i64: 128, 128>}, {transform_indices = @transform_2, window_bounds = array<i64: 1, 128>}, {transform_indices = @transform_3, window_bounds = array<i64: 32, 128>}]} {
    %c0_i32 = arith.constant 0 : i32
    %0 = arith.cmpi eq, %arg2, %c0_i32 : i32
    %1 = arith.extui %0 : i1 to i32
    %c0_i32_0 = arith.constant 0 : i32
    %2 = arith.cmpi ne, %1, %c0_i32_0 : i32
    scf.if %2 {
      %cst_10 = arith.constant 0.000000e+00 : f32
      %12 = vector.broadcast %cst_10 : f32 to vector<32x128xf32>
      %c0_11 = arith.constant 0 : index
      %c0_12 = arith.constant 0 : index
      %13 = vector.load %arg7[%c0_11, %c0_12] : memref<32x128xf32, #tpu.memory_space<vmem>>, vector<32x128xf32>
      tpu.vector_store %arg7[%c0_11, %c0_12], %12 {strides = array<i32>} : memref<32x128xf32, #tpu.memory_space<vmem>>, vector<32x128xf32>,
    } else {
    }
    %c0 = arith.constant 0 : index
    %c0_1 = arith.constant 0 : index
    %3 = vector.load %arg7[%c0, %c0_1] : memref<32x128xf32, #tpu.memory_space<vmem>>, vector<32x128xf32>
    %c0_2 = arith.constant 0 : index
    %c0_3 = arith.constant 0 : index
    %4 = vector.load %arg3[%c0_2, %c0_3] : memref<32x128xf32, #tpu.memory_space<vmem>>, vector<32x128xf32>
    %c0_4 = arith.constant 0 : index
    %c0_5 = arith.constant 0 : index
    %5 = vector.load %arg4[%c0_4, %c0_5] : memref<128x128xf32, #tpu.memory_space<vmem>>, vector<128x128xf32>
    %cst = arith.constant dense<0.000000e+00> : vector<32x128xf32>
    %6 = tpu.matmul %4, %5, %cst {dimension_numbers = #tpu.dot_dimension_numbers<[1], [0], [0], [1], [0, 0, 1, 1], [], []>} : vector<32x128xf32>, vector<128x128xf32>, vector<32x128xf32> -> vector<32x128xf32>
    %7 = arith.addf %3, %6 : vector<32x128xf32>
    %c0_6 = arith.constant 0 : index
    %c0_7 = arith.constant 0 : index
    %8 = vector.load %arg7[%c0_6, %c0_7] : memref<32x128xf32, #tpu.memory_space<vmem>>, vector<32x128xf32>
    tpu.vector_store %arg7[%c0_6, %c0_7], %7 {strides = array<i32>} : memref<32x128xf32, #tpu.memory_space<vmem>>, vector<32x128xf32>,
    %c0_i32_8 = arith.constant 0 : i32
    %9 = arith.cmpi eq, %arg2, %c0_i32_8 : i32
    %10 = arith.extui %9 : i1 to i32
    %c0_i32_9 = arith.constant 0 : i32
    %11 = arith.cmpi ne, %10, %c0_i32_9 : i32
    scf.if %11 {
      %c0_10 = arith.constant 0 : index
      %c0_11 = arith.constant 0 : index
      %12 = vector.load %arg7[%c0_10, %c0_11] : memref<32x128xf32, #tpu.memory_space<vmem>>, vector<32x128xf32>
      %c0_12 = arith.constant 0 : index
      %c0_13 = arith.constant 0 : index
      %13 = vector.load %arg5[%c0_12, %c0_13] : memref<1x128xf32, #tpu.memory_space<vmem>>, vector<1x128xf32>
      %14 = vector.broadcast %13 : vector<1x128xf32> to vector<32x128xf32>
      %15 = arith.addf %12, %14 : vector<32x128xf32>
      %cst_14 = arith.constant 0.000000e+00 : f32
      %16 = vector.broadcast %cst_14 : f32 to vector<32x128xf32>
      %17 = arith.maximumf %15, %16 : vector<32x128xf32>
      %c0_15 = arith.constant 0 : index
      %c0_16 = arith.constant 0 : index
      %18 = vector.load %arg6[%c0_15, %c0_16] : memref<32x128xf32, #tpu.memory_space<vmem>>, vector<32x128xf32>
      tpu.vector_store %arg6[%c0_15, %c0_16], %17 {strides = array<i32>} : memref<32x128xf32, #tpu.memory_space<vmem>>, vector<32x128xf32>,
    } else {
    }
    return
  }
  func.func @transform_0(%arg0: i32, %arg1: i32, %arg2: i32) -> (i32, i32) {
    %c0_i32 = arith.constant 0 : i32
    return %arg1, %arg2 : i32, i32
  }
  func.func @transform_1(%arg0: i32, %arg1: i32, %arg2: i32) -> (i32, i32) {
    %c0_i32 = arith.constant 0 : i32
    return %arg2, %arg0 : i32, i32
  }
  func.func @transform_2(%arg0: i32, %arg1: i32, %arg2: i32) -> (i32, i32) {
    %c0_i32 = arith.constant 0 : i32
    %c0_i32_0 = arith.constant 0 : i32
    return %c0_i32, %arg0 : i32, i32
  }
  func.func @transform_3(%arg0: i32, %arg1: i32, %arg2: i32) -> (i32, i32) {
    %c0_i32 = arith.constant 0 : i32
    return %arg1, %arg0 : i32, i32
  }
}

</mosaic_0001>

<llo_original>
// kernel: tpu_custom_call.1
$region0: #{tpu_custom_call.1}
  #allocation0 [shape = 'u32[]', space=smem, size = 0x4, offset = 0x4, fixed_abs, tag = 'smem constant byte address 0x4 - core index']
  #allocation1 [shape = 'u32[144,128]{1,0:T(1,128)}', space=vmem, size = 0x12000, scoped, tag = 'internal scratch']
  #allocation2 [shape = 'f32[32,128]{1,0:T(8,128)}', space=vmem, size = 0x4000, scoped, tag = 'scratch operand']
  %s0 = inlined_call_operand.hbm [shape: f32[64,128], index: 0, kind: input, shape index: {}]
  %s1 = inlined_call_operand.hbm [shape: f32[128,128], index: 1, kind: input, shape index: {}]
  %s2 = inlined_call_operand.vmem [shape: f32[1,128], index: 2, kind: input, shape index: {}]
  %s3 = inlined_call_operand.hbm [shape: f32[64,128], index: 3, kind: output, shape index: {}]
  %s4 = sld [smem:[#allocation0]]
  $region61: #{tpu_custom_call.1} parent=0
    _
  %s6 = ssub.s32 1, %s4
  %s7 = scalar_select 0, %s6, %s4
  $region1: #{tpu_custom_call.1} parent=0
    #allocation3 [shape = 'u8[32768]{0}', space=vmem, size = 0x8000, scoped, tag = 'input window, operand 0']
    #allocation4 [shape = 's32[2]{0}', space=sflag, size = 0x8, scoped, tag = 'scoped memory for tpu_custom_call.1']
    #allocation5 [shape = 's32[2]{0}', space=sflag, size = 0x8, scoped, tag = 'scoped memory for tpu_custom_call.1']
    #allocation6 [shape = 'u8[65536]{0}', space=vmem, size = 0x10000, scoped, tag = 'input window, operand 1, single buffered']
    #allocation7 [shape = 's32[1]{0}', space=sflag, size = 0x4, scoped, tag = 'scoped memory for tpu_custom_call.1']
    #allocation8 [shape = 'u8[32768]{0}', space=vmem, size = 0x8000, scoped, tag = 'output window, operand 0']
    %8 = vsyncpa [#allocation4], 0
    %s9 = scalar_lea.sflag [#allocation4], 1
    %10 = vsyncpa %s9, 0
    %11 = vsyncpa [#allocation7], 0
    %12 = vsyncpa [#allocation5], 0
    %s13 = scalar_lea.sflag [#allocation5], 1
    %14 = vsyncpa %s13, 0
    loop: start=0, step=1, limit=4
    $region2: #{tpu_custom_call.1} parent=1 // loop_pre_header
      _
    $region3: #{tpu_custom_call.1} parent=1 // loop_header
      %s16 = sphi 0, %s20
      %p17 = scmp.ge.s32.totalorder %s16, 4
      %s23 = sphi 0, %s42
      %s24 = sphi 0, %s38
      %s25 = sphi 0, %s34
      %s26 = sphi 0, %s23
      %s27 = sphi 0, %s24
      %s28 = sphi 0, %s25
      %s29 = sphi 0, %s26
      %s30 = sphi 0, %s27
      %s31 = sphi 0, %s28
      %s47 = sphi 0, %s49
      %s50 = sphi 0, %s47
      %s51 = sphi 0, %s50
      %s67 = sphi 0, %s51
      %s75 = sphi 0, %s77
      %s78 = sphi 0, %s75
      %s79 = sphi 0, %s78
      %s95 = sphi 0, %s79
      %s101 = sphi 0, %s103
      %s104 = sphi 0, %s101
      %s105 = sphi 0, %s104
      %s121 = sphi 0, %s105
      %s129 = sphi 0, %s131
      %s132 = sphi 0, %s129
      %s133 = sphi 0, %s132
      %s149 = sphi 0, %s133
    $region4: #{tpu_custom_call.1} parent=1 // loop_header_branch
      %19 = sbr.rel (%p17) target = $region8
    $region5: #{tpu_custom_call.1} parent=1 // loop_body
      %s21 = ssub.s32 %s16, 1
      %s22 = ssub.s32 %s16, 2
      %s32 = sadd.s32 1, %s25
      %p33 = scmp.ge.s32.totalorder %s32, 1
      %s34 = scalar_select %p33, 0, %s32
      %s35 = sadd.s32 1, %s24
      %s36 = scalar_select %p33, %s35, %s24
      %p37 = scmp.ge.s32.totalorder %s36, 2
      %s38 = scalar_select %p37, 0, %s36
      %s39 = sadd.s32 1, %s23
      %s40 = scalar_select %p37, %s39, %s23
      %p41 = scmp.ge.s32.totalorder %s40, 1
      %s42 = scalar_select %p41, 0, %s40
      %s43 = ssub.s32 %s24, %s38
      %s44 = ssub.s32 %s25, %s34
      %s45 = sor.u32 %s43, %s44
      %p46 = scmp.eq.s32.totalorder %s45, 0
      %s48 = sadd.s32 %s47, 1
      %s49 = scalar_select %p46, %s47, %s48
      %p52 = pneg %p46
      %p53 = scmp.eq.s32.totalorder %s16, 1
      %p54 = por %p52, %p53
      %p55 = scmp.ne.s32.totalorder %s47, %s50
      %p56 = scmp.eq.s32.totalorder %s16, 0
      %p57 = por %p55, %p56
      %p58 = scmp.ne.s32.totalorder %s47, %s50
      %p59 = scmp.eq.s32.totalorder %s21, 1
      %p60 = por %p58, %p59
      %p61 = scmp.ne.s32.totalorder %s50, %s51
      %p62 = scmp.eq.s32.totalorder %s21, 0
      %p63 = por %p61, %p62
      %p64 = scmp.ne.s32.totalorder %s50, %s51
      %p65 = scmp.eq.s32.totalorder %s22, 1
      %p66 = por %p64, %p65
      %p68 = scmp.ne.s32.totalorder %s51, %s67
      %p69 = scmp.eq.s32.totalorder %s22, 0
      %p70 = por %p68, %p69
      %s71 = ssub.s32 %s25, %s34
      %s72 = ssub.s32 %s23, %s42
      %s73 = sor.u32 %s71, %s72
      %p74 = scmp.eq.s32.totalorder %s73, 0
      %s76 = sadd.s32 %s75, 1
      %s77 = scalar_select %p74, %s75, %s76
      %p80 = pneg %p74
      %p81 = scmp.eq.s32.totalorder %s16, 1
      %p82 = por %p80, %p81
      %p83 = scmp.ne.s32.totalorder %s75, %s78
      %p84 = scmp.eq.s32.totalorder %s16, 0
      %p85 = por %p83, %p84
      %p86 = scmp.ne.s32.totalorder %s75, %s78
      %p87 = scmp.eq.s32.totalorder %s21, 1
      %p88 = por %p86, %p87
      %p89 = scmp.ne.s32.totalorder %s78, %s79
      %p90 = scmp.eq.s32.totalorder %s21, 0
      %p91 = por %p89, %p90
      %p92 = scmp.ne.s32.totalorder %s78, %s79
      %p93 = scmp.eq.s32.totalorder %s22, 1
      %p94 = por %p92, %p93
      %p96 = scmp.ne.s32.totalorder %s79, %s95
      %p97 = scmp.eq.s32.totalorder %s22, 0
      %p98 = por %p96, %p97
      %s99 = ssub.s32 %s23, %s42
      %p100 = scmp.eq.s32.totalorder %s99, 0
      %s102 = sadd.s32 %s101, 1
      %s103 = scalar_select %p100, %s101, %s102
      %p106 = pneg %p100
      %p107 = scmp.eq.s32.totalorder %s16, 1
      %p108 = por %p106, %p107
      %p109 = scmp.ne.s32.totalorder %s101, %s104
      %p110 = scmp.eq.s32.totalorder %s16, 0
      %p111 = por %p109, %p110
      %p112 = scmp.ne.s32.totalorder %s101, %s104
      %p113 = scmp.eq.s32.totalorder %s21, 1
      %p114 = por %p112, %p113
      %p115 = scmp.ne.s32.totalorder %s104, %s105
      %p116 = scmp.eq.s32.totalorder %s21, 0
      %p117 = por %p115, %p116
      %p118 = scmp.ne.s32.totalorder %s104, %s105
      %p119 = scmp.eq.s32.totalorder %s22, 1
      %p120 = por %p118, %p119
      %p122 = scmp.ne.s32.totalorder %s105, %s121
      %p123 = scmp.eq.s32.totalorder %s22, 0
      %p124 = por %p122, %p123
      %s125 = ssub.s32 %s24, %s38
      %s126 = ssub.s32 %s23, %s42
      %s127 = sor.u32 %s125, %s126
      %p128 = scmp.eq.s32.totalorder %s127, 0
      %s130 = sadd.s32 %s129, 1
      %s131 = scalar_select %p128, %s129, %s130
      %p134 = pneg %p128
      %p135 = scmp.eq.s32.totalorder %s16, 1
      %p136 = por %p134, %p135
      %p137 = scmp.ne.s32.totalorder %s129, %s132
      %p138 = scmp.eq.s32.totalorder %s16, 0
      %p139 = por %p137, %p138
      %p140 = scmp.ne.s32.totalorder %s129, %s132
      %p141 = scmp.eq.s32.totalorder %s21, 1
      %p142 = por %p140, %p141
      %p143 = scmp.ne.s32.totalorder %s132, %s133
      %p144 = scmp.eq.s32.totalorder %s21, 0
      %p145 = por %p143, %p144
      %p146 = scmp.ne.s32.totalorder %s132, %s133
      %p147 = scmp.eq.s32.totalorder %s22, 1
      %p148 = por %p146, %p147
      %p150 = scmp.ne.s32.totalorder %s133, %s149
      %p151 = scmp.eq.s32.totalorder %s22, 0
      %p152 = por %p150, %p151
      %p153 = scmp.le.s32.totalorder 1, %s16
      %p154 = scmp.lt.s32.totalorder %s16, 3
      %p155 = pnand %p153, %p154
      %p156 = pneg %p155
      // Predicated region
      $region9: #{tpu_custom_call.1} parent=5 // pred_check
        _
      $region10: #{tpu_custom_call.1} parent=5 // pred_check_branch
        %158 = sbr.rel (%p155) target = $region12
      $region11: #{tpu_custom_call.1} parent=5 // pred_region
        %s159 = ssub.s32 %s16, 1
        // Predicated region
        $region13: #{tpu_custom_call.1} parent=11 // pred_check
          %p160 = pneg %p91
        $region14: #{tpu_custom_call.1} parent=11 // pred_check_branch
          %162 = sbr.rel (%p160) target = $region16
        $region15: #{tpu_custom_call.1} parent=11 // pred_region
          %s163 = smul.u32 16, %s28
          %s165 = ssub.s32 2048, 2048
          %166 = vsyncadd [#allocation7], %s165
          %s167 = sadd.s32 %s26, %s163
          %s168 = smul.addr %s167, 128
          %s169 = scalar_lea.hbm %s1, %s168
          %s170 = sshll.u32 [#allocation6], 4
          %s171 = int_to_ptr.vmem [resolvable:$true] %s170
          %176 = dma.hbm_to_vmem [thread:$0]  %s169, 2048, %s171, [#allocation7], 128, 128, 8
        $region16: #{tpu_custom_call.1} parent=11 // pred_fallthru
          _
        // Predicated region
        $region17: #{tpu_custom_call.1} parent=11 // pred_check
          %p177 = pneg %p117
        $region18: #{tpu_custom_call.1} parent=11 // pred_check_branch
          %179 = sbr.rel (%p177) target = $region20
        $region19: #{tpu_custom_call.1} parent=11 // pred_region
          %p180 = scmp.lt.s32.totalorder %s26, 0
          %s181 = scalar_select %p180, %s26, 0
          %s182 = scalar_lea.vmem %s2, %s181
        $region20: #{tpu_custom_call.1} parent=11 // pred_fallthru
          _
      $region12: #{tpu_custom_call.1} parent=5 // pred_fallthru
        _
      %p183 = scmp.lt.s32.totalorder %s16, 2
      // Predicated region
      $region21: #{tpu_custom_call.1} parent=5 // pred_check
        %p184 = pneg %p183
      $region22: #{tpu_custom_call.1} parent=5 // pred_check_branch
        %186 = sbr.rel (%p184) target = $region24
      $region23: #{tpu_custom_call.1} parent=5 // pred_region
        // Predicated region
        $region25: #{tpu_custom_call.1} parent=23 // pred_check
          %p187 = pneg %p57
        $region26: #{tpu_custom_call.1} parent=23 // pred_check_branch
          %189 = sbr.rel (%p187) target = $region28
        $region27: #{tpu_custom_call.1} parent=23 // pred_region
          %s190 = sand.u32 %s47, 1
          %s191 = scalar_lea.sflag [#allocation4], %s190
          %s192 = sand.u32 %s47, 1
          %s193 = smul.addr %s192, 32
          %s194 = scalar_lea.vmem [#allocation3], %s193
          %s195 = smul.u32 4, %s24
          %s197 = ssub.s32 512, 512
          %198 = vsyncadd %s191, %s197
          %s199 = sadd.s32 %s25, %s195
          %s200 = smul.addr %s199, 128
          %s201 = scalar_lea.hbm %s0, %s200
          %s202 = sshll.u32 %s194, 4
          %s203 = int_to_ptr.vmem [resolvable:$true] %s202
          %208 = dma.hbm_to_vmem [thread:$0]  %s201, 512, %s203, %s191, 128, 128, 8
        $region28: #{tpu_custom_call.1} parent=23 // pred_fallthru
          _
      $region24: #{tpu_custom_call.1} parent=5 // pred_fallthru
        _
      %p209 = scmp.le.s32.totalorder 1, %s16
      %p210 = scmp.lt.s32.totalorder %s16, 3
      %p211 = pnand %p209, %p210
      %p212 = pneg %p211
      // Predicated region
      $region29: #{tpu_custom_call.1} parent=5 // pred_check
        _
      $region30: #{tpu_custom_call.1} parent=5 // pred_check_branch
        %214 = sbr.rel (%p211) target = $region32
      $region31: #{tpu_custom_call.1} parent=5 // pred_region
        %s215 = ssub.s32 %s16, 1
        %s216 = sand.u32 %s50, 1
        %s217 = scalar_lea.sflag [#allocation4], %s216
        %s218 = sand.u32 %s50, 1
        %s219 = smul.addr %s218, 32
        %s220 = scalar_lea.vmem [#allocation3], %s219
        // Predicated region
        $region33: #{tpu_custom_call.1} parent=31 // pred_check
          %p221 = pneg %p63
        $region34: #{tpu_custom_call.1} parent=31 // pred_check_branch
          %223 = sbr.rel (%p221) target = $region36
        $region35: #{tpu_custom_call.1} parent=31 // pred_region
          %224 = dma.done %s217, 512
        $region36: #{tpu_custom_call.1} parent=31 // pred_fallthru
          _
        // Predicated region
        $region37: #{tpu_custom_call.1} parent=31 // pred_check
          %p225 = pneg %p91
        $region38: #{tpu_custom_call.1} parent=31 // pred_check_branch
          %227 = sbr.rel (%p225) target = $region40
        $region39: #{tpu_custom_call.1} parent=31 // pred_region
          %228 = dma.done [#allocation7], 2048
        $region40: #{tpu_custom_call.1} parent=31 // pred_fallthru
          _
        %s229 = sand.u32 %s50, 1
        %s230 = scalar_lea.sflag [#allocation4], %s229
        %s231 = sand.u32 %s50, 1
        %s232 = smul.addr %s231, 32
        %s233 = scalar_lea.vmem [#allocation3], %s232
        %p234 = pneg %p63
        %p235 = pneg %p60
        %p236 = pneg %p91
        %p237 = pneg %p88
        %p238 = scmp.lt.s32.totalorder %s26, 0
        %s239 = scalar_select %p238, %s26, 0
        %s240 = scalar_lea.vmem %s2, %s239
        %p241 = pneg %p117
        %p242 = pneg %p114
        %p243 = pneg %p145
        %p244 = pneg %p142
        %s245 = sand.u32 %s132, 1
        %s246 = scalar_lea.sflag [#allocation5], %s245
        %s247 = sand.u32 %s132, 1
        %s248 = smul.addr %s247, 32
        %s249 = scalar_lea.vmem [#allocation8], %s248
        %s250 = smul.u32 4, %s27
        %s251 = smul.u32 16, %s28
        %p252 = scmp.lt.s32.totalorder %s26, 0
        %s253 = scalar_select %p252, %s26, 0
        %s254 = scalar_lea.vmem %s2, %s253
        %s255 = smul.u32 4, %s27
        %p256 = scmp.eq.s32.totalorder %s28, 0
        // Predicated region
        $region41: #{tpu_custom_call.1} parent=31 // pred_check
          %p257 = pneg %p256
        $region42: #{tpu_custom_call.1} parent=31 // pred_check_branch
          %259 = sbr.rel (%p257) target = $region44
        $region43: #{tpu_custom_call.1} parent=31 // pred_region
          %260 = vst [vmem:[#allocation2] sm:$0xff] 0.0
          %261 = vst [vmem:[#allocation2 + $0x8] sm:$0xff] 0.0
          %262 = vst [vmem:[#allocation2 + $0x10] sm:$0xff] 0.0
          %263 = vst [vmem:[#allocation2 + $0x18] sm:$0xff] 0.0
        $region44: #{tpu_custom_call.1} parent=31 // pred_fallthru
          _
        %v264 = vld [vmem:[#allocation2] sm:$0xff]
        %v265 = vld [vmem:[#allocation2 + $0x8] sm:$0xff]
        %v266 = vld [vmem:[#allocation2 + $0x10] sm:$0xff]
        %v267 = vld [vmem:[#allocation2 + $0x18] sm:$0xff]
        %v268 = vld [vmem:[%s220] sm:$0xff]
        %v269 = vld [vmem:[%s220 + $0x8] sm:$0xff]
        %v270 = vld [vmem:[%s220 + $0x10] sm:$0xff]
        %v271 = vld [vmem:[%s220 + $0x18] sm:$0xff]
        %v272 = vld [vmem:[#allocation6] sm:$0xff]
        %v273 = vld [vmem:[#allocation6 + $0x8] sm:$0xff]
        %v274 = vld [vmem:[#allocation6 + $0x10] sm:$0xff]
        %v275 = vld [vmem:[#allocation6 + $0x18] sm:$0xff]
        %v276 = vld [vmem:[#allocation6 + $0x20] sm:$0xff]
        %v277 = vld [vmem:[#allocation6 + $0x28] sm:$0xff]
        %v278 = vld [vmem:[#allocation6 + $0x30] sm:$0xff]
        %v279 = vld [vmem:[#allocation6 + $0x38] sm:$0xff]
        %v280 = vld [vmem:[#allocation6 + $0x40] sm:$0xff]
        %v281 = vld [vmem:[#allocation6 + $0x48] sm:$0xff]
        %v282 = vld [vmem:[#allocation6 + $0x50] sm:$0xff]
        %v283 = vld [vmem:[#allocation6 + $0x58] sm:$0xff]
        %v284 = vld [vmem:[#allocation6 + $0x60] sm:$0xff]
        %v285 = vld [vmem:[#allocation6 + $0x68] sm:$0xff]
        %v286 = vld [vmem:[#allocation6 + $0x70] sm:$0xff]
        %v287 = vld [vmem:[#allocation6 + $0x78] sm:$0xff]
        %288 = vmatprep.subr.mxu0 0.0
        %289 = vmatpush1.msra.mxu0 %v272
        %290 = vmatprep.subr.mxu0 0.0
        %291 = vmatpush1.msra.mxu0 %v273
        %292 = vmatprep.subr.mxu0 0.0
        %293 = vmatpush1.msra.mxu0 %v274
        %294 = vmatprep.subr.mxu0 0.0
        %295 = vmatpush1.msra.mxu0 %v275
        %296 = vmatprep.subr.mxu0 0.0
        %297 = vmatpush1.msra.mxu0 %v276
        %298 = vmatprep.subr.mxu0 0.0
        %299 = vmatpush1.msra.mxu0 %v277
        %300 = vmatprep.subr.mxu0 0.0
        %301 = vmatpush1.msra.mxu0 %v278
        %302 = vmatprep.subr.mxu0 0.0
        %303 = vmatpush1.msra.mxu0 %v279
        %304 = vmatprep.subr.mxu0 0.0
        %305 = vmatpush1.msra.mxu0 %v280
        %306 = vmatprep.subr.mxu0 0.0
        %307 = vmatpush1.msra.mxu0 %v281
        %308 = vmatprep.subr.mxu0 0.0
        %309 = vmatpush1.msra.mxu0 %v282
        %310 = vmatprep.subr.mxu0 0.0
        %311 = vmatpush1.msra.mxu0 %v283
        %312 = vmatprep.subr.mxu0 0.0
        %313 = vmatpush1.msra.mxu0 %v284
        %314 = vmatprep.subr.mxu0 0.0
        %315 = vmatpush1.msra.mxu0 %v285
        %316 = vmatprep.subr.mxu0 0.0
        %317 = vmatpush1.msra.mxu0 %v286
        %318 = vmatprep.subr.mxu0 0.0
        %319 = vmatpush1.msra.mxu0 %v287
        %320 = vmatprep.subr.mxu0 0.0
        %321 = vmatpush1.msra.mxu0 0.0
        %322 = vmatprep.subr.mxu0 0.0
        %323 = vmatpush1.msra.mxu0 0.0
        %324 = vmatprep.subr.mxu0 0.0
        %325 = vmatpush1.msra.mxu0 0.0
        %326 = vmatprep.subr.mxu0 0.0
        %327 = vmatpush1.msra.mxu0 0.0
        %328 = vmatprep.subr.mxu0 0.0
        %329 = vmatpush1.msra.mxu0 0.0
        %330 = vmatprep.subr.mxu0 0.0
        %331 = vmatpush1.msra.mxu0 0.0
        %332 = vmatprep.subr.mxu0 0.0
        %333 = vmatpush1.msra.mxu0 0.0
        %334 = vmatprep.subr.mxu0 0.0
        %335 = vmatpush1.msra.mxu0 0.0
        %336 = vmatprep.subr.mxu0 0.0
        %337 = vmatpush1.msra.mxu0 0.0
        %338 = vmatprep.subr.mxu0 0.0
        %339 = vmatpush1.msra.mxu0 0.0
        %340 = vmatprep.subr.mxu0 0.0
        %341 = vmatpush1.msra.mxu0 0.0
        %342 = vmatprep.subr.mxu0 0.0
        %343 = vmatpush1.msra.mxu0 0.0
        %344 = vmatprep.subr.mxu0 0.0
        %345 = vmatpush1.msra.mxu0 0.0
        %346 = vmatprep.subr.mxu0 0.0
        %347 = vmatpush1.msra.mxu0 0.0
        %348 = vmatprep.subr.mxu0 0.0
        %349 = vmatpush1.msra.mxu0 0.0
        %350 = vmatprep.subr.mxu0 0.0
        %351 = vmatpush1.msra.mxu0 0.0
        %352 = vmatprep.mubr.f32.mxu0 0.0
        %353 = vmatmul.mubr.f32.gmra.mrb[0].mxu0 %v268
        %v354 = vpop.f32.mrb[0].mxu0
        %v355 = vadd.f32 0.0, %v354
        %v356 = vpop.f32.mrb[0].mxu0
        %357 = vmatprep.mubr.f32.mxu0 0.0
        %358 = vmatmul.mubr.f32.gmra.mrb[0].mxu0 %v269
        %v359 = vpop.f32.mrb[0].mxu0
        %v360 = vadd.f32 0.0, %v359
        %v361 = vpop.f32.mrb[0].mxu0
        %362 = vmatprep.mubr.f32.mxu0 0.0
        %363 = vmatmul.mubr.f32.gmra.mrb[0].mxu0 %v270
        %v364 = vpop.f32.mrb[0].mxu0
        %v365 = vadd.f32 0.0, %v364
        %v366 = vpop.f32.mrb[0].mxu0
        %367 = vmatprep.mubr.f32.mxu0 0.0
        %368 = vmatmul.mubr.f32.gmra.mrb[0].mxu0 %v271
        %v369 = vpop.f32.mrb[0].mxu0
        %v370 = vadd.f32 0.0, %v369
        %v371 = vpop.f32.mrb[0].mxu0
        %372 = vdwg.mxu0
        %v373 = vadd.f32 %v264, %v355
        %v374 = vadd.f32 %v265, %v360
        %v375 = vadd.f32 %v266, %v365
        %v376 = vadd.f32 %v267, %v370
        %377 = vst [vmem:[#allocation2] sm:$0xff] %v373
        %378 = vst [vmem:[#allocation2 + $0x8] sm:$0xff] %v374
        %379 = vst [vmem:[#allocation2 + $0x10] sm:$0xff] %v375
        %380 = vst [vmem:[#allocation2 + $0x18] sm:$0xff] %v376
        // Predicated region
        $region45: #{tpu_custom_call.1} parent=31 // pred_check
          %p381 = pneg %p256
        $region46: #{tpu_custom_call.1} parent=31 // pred_check_branch
          %383 = sbr.rel (%p381) target = $region48
        $region47: #{tpu_custom_call.1} parent=31 // pred_region
          %v384 = vld [vmem:[#allocation2] sm:$0xff]
          %v385 = vld [vmem:[#allocation2 + $0x8] sm:$0xff]
          %v386 = vld [vmem:[#allocation2 + $0x10] sm:$0xff]
          %v387 = vld [vmem:[#allocation2 + $0x18] sm:$0xff]
          %v388 = vld [vmem:[%s254] sm:$0x1]
          %v390 = vlaneseq
          %v391 = vshrl.u32 %v390, 7
          %v392 = vsub.s32 0, %v391
          %v393 = vrot.slane %v388, %v392
          %v395 = vadd.f32 %v384, %v393
          %v396 = vadd.f32 %v385, %v393
          %v397 = vadd.f32 %v386, %v393
          %v398 = vadd.f32 %v387, %v393
          %v399 = vmax.f32 %v395, 0.0
          %v400 = vmax.f32 %v396, 0.0
          %v401 = vmax.f32 %v397, 0.0
          %v402 = vmax.f32 %v398, 0.0
          %403 = vst [vmem:[%s249] sm:$0xff] %v399
          %404 = vst [vmem:[%s249 + $0x8] sm:$0xff] %v400
          %405 = vst [vmem:[%s249 + $0x10] sm:$0xff] %v401
          %406 = vst [vmem:[%s249 + $0x18] sm:$0xff] %v402
        $region48: #{tpu_custom_call.1} parent=31 // pred_fallthru
          _
        %s407 = sand.u32 %s132, 1
        %s408 = scalar_lea.sflag [#allocation5], %s407
        %s409 = sand.u32 %s132, 1
        %s410 = smul.addr %s409, 32
        %s411 = scalar_lea.vmem [#allocation8], %s410
        // Predicated region
        $region49: #{tpu_custom_call.1} parent=31 // pred_check
          %p412 = pneg %p142
        $region50: #{tpu_custom_call.1} parent=31 // pred_check_branch
          %414 = sbr.rel (%p412) target = $region52
        $region51: #{tpu_custom_call.1} parent=31 // pred_region
          %s415 = smul.u32 4, %s27
          %s417 = ssub.s32 512, 512
          %418 = vsyncadd %s408, %s417
          %s419 = sadd.s32 %s26, %s415
          %s420 = smul.addr %s419, 128
          %s421 = scalar_lea.hbm %s3, %s420
          %s422 = sshll.u32 %s411, 4
          %s423 = int_to_ptr.vmem [resolvable:$true] %s422
          %428 = dma.vmem_to_hbm [thread:$0]  %s423, 512, %s421, %s408, 128, 128, 8
        $region52: #{tpu_custom_call.1} parent=31 // pred_fallthru
          _
      $region32: #{tpu_custom_call.1} parent=5 // pred_fallthru
        _
      %p429 = scmp.le.s32.totalorder 2, %s16
      // Predicated region
      $region53: #{tpu_custom_call.1} parent=5 // pred_check
        %p430 = pneg %p429
      $region54: #{tpu_custom_call.1} parent=5 // pred_check_branch
        %432 = sbr.rel (%p430) target = $region56
      $region55: #{tpu_custom_call.1} parent=5 // pred_region
        %s433 = ssub.s32 %s16, 2
        // Predicated region
        $region57: #{tpu_custom_call.1} parent=55 // pred_check
          %p434 = pneg %p148
        $region58: #{tpu_custom_call.1} parent=55 // pred_check_branch
          %436 = sbr.rel (%p434) target = $region60
        $region59: #{tpu_custom_call.1} parent=55 // pred_region
          %s437 = sand.u32 %s133, 1
          %s438 = scalar_lea.sflag [#allocation5], %s437
          %s439 = sand.u32 %s133, 1
          %s440 = smul.addr %s439, 32
          %s441 = scalar_lea.vmem [#allocation8], %s440
          %442 = dma.done %s438, 512
        $region60: #{tpu_custom_call.1} parent=55 // pred_fallthru
          _
      $region56: #{tpu_custom_call.1} parent=5 // pred_fallthru
        _
    $region6: #{tpu_custom_call.1} parent=1 // loop_footer
      %s20 = sadd.s32 1, %s16
    $region7: #{tpu_custom_call.1} parent=1 // loop_footer_branch
      %15 = sbr.rel target = $region3
    $region8: #{tpu_custom_call.1} parent=1 // loop_exit
      _
    %443 = vsyncpa [#allocation4], 1
    %s444 = scalar_lea.sflag [#allocation4], 1
    %445 = vsyncpa %s444, 1
    %446 = vsyncpa [#allocation7], 1
    %447 = vsyncpa [#allocation5], 1
    %s448 = scalar_lea.sflag [#allocation5], 1
    %449 = vsyncpa %s448, 1

</llo_original>
